<compile_context>
chip_gen: v6e
topology: v6e:2x2x1
jax: 0.10.0
libtpu: 0.0.40
codegen_flags: <defaults>
</compile_context>

<pallas_src>
import functools

import jax
import jax.numpy as jnp
from jax.experimental import pallas as pl
from jax.experimental.pallas import tpu as pltpu


def _round_up(x, m):
    return ((x + m - 1) // m) * m


def _highway_kernel(x_ref, w_ref, b_ref, o_ref, *, layer_num, d, compute_dtype):
    # x_ref: (TM, D)   w_ref: (L, D, 2D)   b_ref: (L, 1, 2D) f32   o_ref: (TM, D)
    x = x_ref[...].astype(jnp.float32)
    # layer_num is small (QANet uses 2) and static -> unrolled Python loop.
    # TODO(synk): for layer_num > ~4 switch to lax.fori_loop with dynamic
    # w_ref[i]/b_ref[i] indexing to bound live ranges and avoid vreg spills.
    for i in range(layer_num):
        # Single fused (D, 2D) matmul per layer: [linear | gate] halves.
        proj = jnp.dot(
            x.astype(compute_dtype), w_ref[i],
            preferred_element_type=jnp.float32,
        ) + b_ref[i]
        nonlinear = jnp.maximum(proj[:, :d], 0.0)
        g = proj[:, d:]
        # sigmoid(g) = 1 / (1 + exp(-g)); exp and the approximate reciprocal
        # both go to the EUP slot -> keeps the divide off the (near-binding)
        # VPU slot.
        gate = pl.reciprocal(1.0 + jnp.exp(-g), approx=True)
        # gate*nonlinear + (1-gate)*x  ==  x + gate*(nonlinear - x)
        x = x + gate * (nonlinear - x)
    o_ref[...] = x.astype(o_ref.dtype)


def highway_pallas(x, wl, bl, wg, bg, *, row_tile=1024, use_bf16_mxu=True):
    """x: (B, S, D); wl/wg: (L, D, D) stored as (in, out) so the kernel does
    x @ W + b; bl/bg: (L, D). Returns (B, S, D) in x.dtype."""
    B, S, D = x.shape
    L = wl.shape[0]
    rows = B * S

    # ---- dtypes ------------------------------------------------------------
    # MXU operand dtype. Elementwise math stays f32 regardless.
    compute_dtype = (jnp.bfloat16
                     if (use_bf16_mxu or x.dtype == jnp.bfloat16)
                     else jnp.float32)
    x_itemsize = jnp.dtype(x.dtype).itemsize
    w_itemsize = jnp.dtype(compute_dtype).itemsize

    # ---- row tiling ---------------------------------------------------------
    # Multiple of 16 covers the worst-case sublane packing (bf16).
    row_tile = max(16, min(_round_up(row_tile, 16), _round_up(rows, 16)))
    # v7x megacore: make sure the "parallel" axis has >= 2 grid steps when the
    # problem is big enough to split.
    if rows > 32:
        half_rows = _round_up((rows + 1) // 2, 16)
        row_tile = min(row_tile, half_rows)

    # VMEM estimate: double-buffered x/out tiles, weights/biases (constant
    # index_map but still 2 buffers allocated), PLUS Mosaic-internal f32
    # temporaries (x copy + per-layer proj/gate/nonlinear) per the review.
    def _vmem_bytes(tm):
        io = 2 * (2 * tm * D * x_itemsize)            # x + out, double-buffered
        w = 2 * (L * D * 2 * D * w_itemsize)          # fused weights
        b = 2 * (L * 2 * D * 4)                       # fused biases (f32)
        scratch = tm * D * 4 + L * (tm * 2 * D * 4)   # internal f32 temporaries
        return io + w + b + scratch

    _VMEM_TARGET = 40 * 1024 * 1024   # >=16 MiB headroom under v7x's 64 MiB
    while row_tile > 16 and _vmem_bytes(row_tile) > _VMEM_TARGET:
        row_tile = max(16, ((row_tile // 2) // 16) * 16)

    vmem_limit = int(min(64 * 1024 * 1024,
                         max(_vmem_bytes(row_tile) + 4 * 1024 * 1024,
                             16 * 1024 * 1024)))

    # ---- operand preparation (weights only; x is passed through untouched) --
    x2d = x.reshape(rows, D)                                   # metadata-only
    w_cat = jnp.concatenate([wl, wg], axis=-1).astype(compute_dtype)   # (L,D,2D)
    b_cat = jnp.concatenate([bl, bg], axis=-1).astype(jnp.float32)     # (L,2D)
    b_cat = b_cat.reshape(L, 1, 2 * D)

    grid = (pl.cdiv(rows, row_tile),)
    kernel = functools.partial(
        _highway_kernel, layer_num=L, d=D, compute_dtype=compute_dtype)

    out = pl.pallas_call(
        kernel,
        out_shape=jax.ShapeDtypeStruct((rows, D), x.dtype),
        grid_spec=pltpu.PrefetchScalarGridSpec(
            num_scalar_prefetch=0,
            grid=grid,
            in_specs=[
                # Feature dim = full D (block-dim == array-dim exemption), so
                # no host-side feature padding is needed; lane-dense for D=128.
                pl.BlockSpec((row_tile, D), lambda i: (i, 0)),       # x rows
                pl.BlockSpec((L, D, 2 * D), lambda i: (0, 0, 0)),    # fused W
                pl.BlockSpec((L, 1, 2 * D), lambda i: (0, 0, 0)),    # fused b
            ],
            out_specs=pl.BlockSpec((row_tile, D), lambda i: (i, 0)),
        ),
        compiler_params=pltpu.CompilerParams(
            dimension_semantics=("parallel",),
            vmem_limit_bytes=vmem_limit,
        ),
    )(x2d, w_cat, b_cat)

    return out.reshape(B, S, D)                                # metadata-only


def highway_reference(x, wl, bl, wg, bg):
    """Pure-JAX reference matching the PyTorch forward (all f32)."""
    xf = x.astype(jnp.float32)
    L = wl.shape[0]
    for i in range(L):
        gate = jax.nn.sigmoid(xf @ wg[i].astype(jnp.float32) + bg[i])
        nonlinear = jax.nn.relu(xf @ wl[i].astype(jnp.float32) + bl[i])
        xf = gate * nonlinear + (1.0 - gate) * xf
    return xf.astype(x.dtype)


if __name__ == "__main__":
    # Small shapes consistent with the module: Linear(dim, dim) applied over
    # the last axis of a 3-D input (QANet-style feature dim = 128).
    batch, seq, dim = 2, 8, 128
    layer_num = 2

    key = jax.random.PRNGKey(0)
    kx, kwl, kbl, kwg, kbg = jax.random.split(key, 5)

    x = jax.random.normal(kx, (batch, seq, dim), dtype=jnp.float32)

    # Deterministic params mimicking nn.Linear's uniform(-1/sqrt(dim), 1/sqrt(dim)),
    # stored directly as (in, out) so the kernel computes x @ W + b.
    bound = 1.0 / (dim ** 0.5)
    wl = jax.random.uniform(kwl, (layer_num, dim, dim), jnp.float32, -bound, bound)
    bl = jax.random.uniform(kbl, (layer_num, dim), jnp.float32, -bound, bound)
    wg = jax.random.uniform(kwg, (layer_num, dim, dim), jnp.float32, -bound, bound)
    bg = jax.random.uniform(kbg, (layer_num, dim), jnp.float32, -bound, bound)

    ref = highway_reference(x, wl, bl, wg, bg)

    # Default fast path: bf16 MXU operands, f32 accumulate + f32 elementwise.
    out_fast = jax.block_until_ready(highway_pallas(x, wl, bl, wg, bg))
    assert out_fast.shape == x.shape
    assert jnp.allclose(out_fast, ref, atol=3e-2, rtol=3e-2), \
        "bf16-MXU path mismatch vs reference"

    # Strict-f32 matmul path (only the approx-reciprocal sigmoid differs).
    out_f32 = jax.block_until_ready(
        highway_pallas(x, wl, bl, wg, bg, use_bf16_mxu=False))
    assert jnp.allclose(out_f32, ref, atol=1e-2, rtol=1e-2), \
        "f32-MXU path mismatch vs reference"

    print("KERNEL_OK")
</pallas_src>

<mosaic_0001>
module attributes {stable_mosaic.version = 11 : i64} {
  func.func @_highway_kernel(%arg0: i32, %arg1: memref<16x128xf32, #tpu.memory_space<vmem>>, %arg2: memref<2x128x256xbf16, #tpu.memory_space<vmem>>, %arg3: memref<2x1x256xf32, #tpu.memory_space<vmem>>, %arg4: memref<16x128xf32, #tpu.memory_space<vmem>>) attributes {dimension_semantics = [#tpu.dimension_semantics<parallel>], iteration_bounds = array<i64: 1>, scalar_prefetch = 0 : i64, scratch_operands = 0 : i64, tpu.core_type = #tpu.core_type<tc>, window_params = [{transform_indices = @transform_0, window_bounds = array<i64: 16, 128>}, {pipeline_mode = #tpu.pipeline_mode<synchronous>, transform_indices = @transform_1, window_bounds = array<i64: 2, 128, 256>}, {pipeline_mode = #tpu.pipeline_mode<synchronous>, transform_indices = @transform_2, window_bounds = array<i64: 2, 1, 256>}, {transform_indices = @transform_3, window_bounds = array<i64: 16, 128>}]} {
    %c0 = arith.constant 0 : index
    %c0_0 = arith.constant 0 : index
    %0 = vector.load %arg1[%c0, %c0_0] : memref<16x128xf32, #tpu.memory_space<vmem>>, vector<16x128xf32>
    %1 = arith.truncf %0 : vector<16x128xf32> to vector<16x128xbf16>
    %c0_1 = arith.constant 0 : index
    %c0_2 = arith.constant 0 : index
    %c0_3 = arith.constant 0 : index
    %2 = vector.load %arg2[%c0_1, %c0_2, %c0_3] : memref<2x128x256xbf16, #tpu.memory_space<vmem>>, vector<1x128x256xbf16>
    %3 = vector.shape_cast %2 : vector<1x128x256xbf16> to vector<128x256xbf16>
    %cst = arith.constant dense<0.000000e+00> : vector<16x256xf32>
    %4 = tpu.matmul %1, %3, %cst {dimension_numbers = #tpu.dot_dimension_numbers<[1], [0], [0], [1], [0, 0, 1, 1], [], []>} : vector<16x128xbf16>, vector<128x256xbf16>, vector<16x256xf32> -> vector<16x256xf32>
    %c0_4 = arith.constant 0 : index
    %c0_5 = arith.constant 0 : index
    %c0_6 = arith.constant 0 : index
    %5 = vector.load %arg3[%c0_4, %c0_5, %c0_6] : memref<2x1x256xf32, #tpu.memory_space<vmem>>, vector<1x1x256xf32>
    %6 = vector.shape_cast %5 : vector<1x1x256xf32> to vector<1x256xf32>
    %7 = vector.broadcast %6 : vector<1x256xf32> to vector<16x256xf32>
    %8 = arith.addf %4, %7 : vector<16x256xf32>
    %9 = vector.extract_strided_slice %8 {offsets = [0, 0], sizes = [16, 128], strides = [1, 1]} : vector<16x256xf32> to vector<16x128xf32>
    %cst_7 = arith.constant 0.000000e+00 : f32
    %10 = vector.broadcast %cst_7 : f32 to vector<16x128xf32>
    %11 = arith.maximumf %9, %10 : vector<16x128xf32>
    %12 = vector.extract_strided_slice %8 {offsets = [0, 128], sizes = [16, 128], strides = [1, 1]} : vector<16x256xf32> to vector<16x128xf32>
    %cst_8 = arith.constant 0.000000e+00 : f32
    %13 = vector.broadcast %cst_8 : f32 to vector<16x128xf32>
    %14 = arith.subf %13, %12 : vector<16x128xf32>
    %15 = math.exp %14 : vector<16x128xf32>
    %cst_9 = arith.constant 1.000000e+00 : f32
    %16 = vector.broadcast %cst_9 : f32 to vector<16x128xf32>
    %17 = arith.addf %16, %15 : vector<16x128xf32>
    %18 = tpu.reciprocal %17 {approx = true} : vector<16x128xf32> -> vector<16x128xf32>
    %19 = arith.subf %11, %0 : vector<16x128xf32>
    %20 = arith.mulf %18, %19 : vector<16x128xf32>
    %21 = arith.addf %0, %20 : vector<16x128xf32>
    %22 = arith.truncf %21 : vector<16x128xf32> to vector<16x128xbf16>
    %c1 = arith.constant 1 : index
    %c0_10 = arith.constant 0 : index
    %c0_11 = arith.constant 0 : index
    %23 = vector.load %arg2[%c1, %c0_10, %c0_11] : memref<2x128x256xbf16, #tpu.memory_space<vmem>>, vector<1x128x256xbf16>
    %24 = vector.shape_cast %23 : vector<1x128x256xbf16> to vector<128x256xbf16>
    %cst_12 = arith.constant dense<0.000000e+00> : vector<16x256xf32>
    %25 = tpu.matmul %22, %24, %cst_12 {dimension_numbers = #tpu.dot_dimension_numbers<[1], [0], [0], [1], [0, 0, 1, 1], [], []>} : vector<16x128xbf16>, vector<128x256xbf16>, vector<16x256xf32> -> vector<16x256xf32>
    %c1_13 = arith.constant 1 : index
    %c0_14 = arith.constant 0 : index
    %c0_15 = arith.constant 0 : index
    %26 = vector.load %arg3[%c1_13, %c0_14, %c0_15] : memref<2x1x256xf32, #tpu.memory_space<vmem>>, vector<1x1x256xf32>
    %27 = vector.shape_cast %26 : vector<1x1x256xf32> to vector<1x256xf32>
    %28 = vector.broadcast %27 : vector<1x256xf32> to vector<16x256xf32>
    %29 = arith.addf %25, %28 : vector<16x256xf32>
    %30 = vector.extract_strided_slice %29 {offsets = [0, 0], sizes = [16, 128], strides = [1, 1]} : vector<16x256xf32> to vector<16x128xf32>
    %cst_16 = arith.constant 0.000000e+00 : f32
    %31 = vector.broadcast %cst_16 : f32 to vector<16x128xf32>
    %32 = arith.maximumf %30, %31 : vector<16x128xf32>
    %33 = vector.extract_strided_slice %29 {offsets = [0, 128], sizes = [16, 128], strides = [1, 1]} : vector<16x256xf32> to vector<16x128xf32>
    %cst_17 = arith.constant 0.000000e+00 : f32
    %34 = vector.broadcast %cst_17 : f32 to vector<16x128xf32>
    %35 = arith.subf %34, %33 : vector<16x128xf32>
    %36 = math.exp %35 : vector<16x128xf32>
    %cst_18 = arith.constant 1.000000e+00 : f32
    %37 = vector.broadcast %cst_18 : f32 to vector<16x128xf32>
    %38 = arith.addf %37, %36 : vector<16x128xf32>
    %39 = tpu.reciprocal %38 {approx = true} : vector<16x128xf32> -> vector<16x128xf32>
    %40 = arith.subf %32, %21 : vector<16x128xf32>
    %41 = arith.mulf %39, %40 : vector<16x128xf32>
    %42 = arith.addf %21, %41 : vector<16x128xf32>
    %c0_19 = arith.constant 0 : index
    %c0_20 = arith.constant 0 : index
    %43 = vector.load %arg4[%c0_19, %c0_20] : memref<16x128xf32, #tpu.memory_space<vmem>>, vector<16x128xf32>
    tpu.vector_store %arg4[%c0_19, %c0_20], %42 {strides = array<i32>} : memref<16x128xf32, #tpu.memory_space<vmem>>, vector<16x128xf32>,
    return
  }
  func.func @transform_0(%arg0: i32) -> (i32, i32) {
    %c0_i32 = arith.constant 0 : i32
    %c0_i32_0 = arith.constant 0 : i32
    return %arg0, %c0_i32 : i32, i32
  }
  func.func @transform_1(%arg0: i32) -> (i32, i32, i32) {
    %c0_i32 = arith.constant 0 : i32
    %c0_i32_0 = arith.constant 0 : i32
    %c0_i32_1 = arith.constant 0 : i32
    %c0_i32_2 = arith.constant 0 : i32
    return %c0_i32, %c0_i32_0, %c0_i32_1 : i32, i32, i32
  }
  func.func @transform_2(%arg0: i32) -> (i32, i32, i32) {
    %c0_i32 = arith.constant 0 : i32
    %c0_i32_0 = arith.constant 0 : i32
    %c0_i32_1 = arith.constant 0 : i32
    %c0_i32_2 = arith.constant 0 : i32
    return %c0_i32, %c0_i32_0, %c0_i32_1 : i32, i32, i32
  }
  func.func @transform_3(%arg0: i32) -> (i32, i32) {
    %c0_i32 = arith.constant 0 : i32
    %c0_i32_0 = arith.constant 0 : i32
    return %arg0, %c0_i32 : i32, i32
  }
}

</mosaic_0001>

<llo_original>
// kernel: tpu_custom_call.1
$region0: #{tpu_custom_call.1}
  #allocation0 [shape = 'u32[]', space=smem, size = 0x4, offset = 0x4, fixed_abs, tag = 'smem constant byte address 0x4 - core index']
  #allocation1 [shape = 'u32[144,128]{1,0:T(1,128)}', space=vmem, size = 0x12000, scoped, tag = 'internal scratch']
  %s0 = inlined_call_operand.hbm [shape: f32[16,128], index: 0, kind: input, shape index: {}]
  %s1 = inlined_call_operand.hbm [shape: bf16[2,128,256], index: 1, kind: input, shape index: {}]
  %s2 = inlined_call_operand.hbm [shape: f32[2,1,256], index: 2, kind: input, shape index: {}]
  %s3 = inlined_call_operand.hbm [shape: f32[16,128], index: 3, kind: output, shape index: {}]
  %s4 = sld [smem:[#allocation0]]
  $region34: #{tpu_custom_call.1} parent=0
    _
  %s6 = ssub.s32 1, %s4
  %s7 = scalar_select 0, %s6, %s4
  $region1: #{tpu_custom_call.1} parent=0
    #allocation2 [shape = 'u8[8192]{0}', space=vmem, size = 0x2000, scoped, tag = 'input window, operand 0, single buffered']
    #allocation3 [shape = 's32[1]{0}', space=sflag, size = 0x4, scoped, tag = 'scoped memory for tpu_custom_call.1']
    #allocation4 [shape = 's32[1]{0}', space=sflag, size = 0x4, scoped, tag = 'scoped memory for tpu_custom_call.1']
    #allocation5 [shape = 'u8[131072]{0}', space=vmem, size = 0x20000, scoped, tag = 'input window, operand 1, single buffered']
    #allocation6 [shape = 's32[1]{0}', space=sflag, size = 0x4, scoped, tag = 'scoped memory for tpu_custom_call.1']
    #allocation7 [shape = 'u8[2048]{0}', space=vmem, size = 0x800, scoped, tag = 'input window, operand 2, single buffered']
    #allocation8 [shape = 'u8[8192]{0}', space=vmem, size = 0x2000, scoped, tag = 'output window, operand 0, single buffered']
    %8 = vsyncpa [#allocation3], 0
    %9 = vsyncpa [#allocation6], 0
    %10 = vsyncpa [#allocation4], 0
    // Predicated region
    $region2: #{tpu_custom_call.1} parent=1 // pred_check
      _
    $region3: #{tpu_custom_call.1} parent=1 // pred_check_branch
      %12 = sbr.rel (0) target = $region5
    $region4: #{tpu_custom_call.1} parent=1 // pred_region
      %s14 = ssub.s32 256, 256
      %15 = vsyncadd [#allocation3], %s14
      %s16 = sshll.u32 [#allocation2], 4
      %s17 = int_to_ptr.vmem [resolvable:$true] %s16
      %22 = dma.hbm_to_vmem [thread:$0]  %s0, 256, %s17, [#allocation3], 128, 128, 8
    $region5: #{tpu_custom_call.1} parent=1 // pred_fallthru
      _
    // Predicated region
    $region6: #{tpu_custom_call.1} parent=1 // pred_check
      _
    $region7: #{tpu_custom_call.1} parent=1 // pred_check_branch
      %24 = sbr.rel (0) target = $region9
    $region8: #{tpu_custom_call.1} parent=1 // pred_region
      %s26 = ssub.s32 4096, 4096
      %27 = vsyncadd [#allocation6], %s26
      %s28 = sshll.u32 [#allocation5], 4
      %s29 = int_to_ptr.vmem [resolvable:$true] %s28
      %34 = dma.hbm_to_vmem [thread:$0]  %s1, 4096, %s29, [#allocation6], 128, 128, 8
    $region9: #{tpu_custom_call.1} parent=1 // pred_fallthru
      _
    // Predicated region
    $region10: #{tpu_custom_call.1} parent=1 // pred_check
      _
    $region11: #{tpu_custom_call.1} parent=1 // pred_check_branch
      %36 = sbr.rel (0) target = $region13
    $region12: #{tpu_custom_call.1} parent=1 // pred_region
      %s38 = ssub.s32 64, 64
      %39 = vsyncadd [#allocation6], %s38
      %s40 = sshll.u32 [#allocation7], 4
      %s41 = int_to_ptr.vmem [resolvable:$true] %s40
      %46 = dma.hbm_to_vmem [thread:$0]  %s2, 64, %s41, [#allocation6], 32, 32, 2
    $region13: #{tpu_custom_call.1} parent=1 // pred_fallthru
      _
    // Predicated region
    $region14: #{tpu_custom_call.1} parent=1 // pred_check
      _
    $region15: #{tpu_custom_call.1} parent=1 // pred_check_branch
      %48 = sbr.rel (0) target = $region17
    $region16: #{tpu_custom_call.1} parent=1 // pred_region
      %49 = dma.done [#allocation3], 256
    $region17: #{tpu_custom_call.1} parent=1 // pred_fallthru
      _
    // Predicated region
    $region18: #{tpu_custom_call.1} parent=1 // pred_check
      _
    $region19: #{tpu_custom_call.1} parent=1 // pred_check_branch
      %51 = sbr.rel (0) target = $region21
    $region20: #{tpu_custom_call.1} parent=1 // pred_region
      %52 = dma.done [#allocation6], 4096
    $region21: #{tpu_custom_call.1} parent=1 // pred_fallthru
      _
    // Predicated region
    $region22: #{tpu_custom_call.1} parent=1 // pred_check
      _
    $region23: #{tpu_custom_call.1} parent=1 // pred_check_branch
      %54 = sbr.rel (0) target = $region25
    $region24: #{tpu_custom_call.1} parent=1 // pred_region
      %55 = dma.done [#allocation6], 64
    $region25: #{tpu_custom_call.1} parent=1 // pred_fallthru
      _
    %v57 = vld [vmem:[#allocation2] sm:$0xff]
    %v58 = vld [vmem:[#allocation2 + $0x8] sm:$0xff]
    %v59 = vpack.c.bf16 %v58, %v57
    %v60 = vld [vmem:[#allocation5] sm:$0xff]
    %v61 = vld [vmem:[#allocation5 + $0x8] sm:$0xff]
    %v62 = vld [vmem:[#allocation5 + $0x10] sm:$0xff]
    %v63 = vld [vmem:[#allocation5 + $0x18] sm:$0xff]
    %v64 = vld [vmem:[#allocation5 + $0x20] sm:$0xff]
    %v65 = vld [vmem:[#allocation5 + $0x28] sm:$0xff]
    %v66 = vld [vmem:[#allocation5 + $0x30] sm:$0xff]
    %v67 = vld [vmem:[#allocation5 + $0x38] sm:$0xff]
    %v68 = vld [vmem:[#allocation5 + $0x40] sm:$0xff]
    %v69 = vld [vmem:[#allocation5 + $0x48] sm:$0xff]
    %v70 = vld [vmem:[#allocation5 + $0x50] sm:$0xff]
    %v71 = vld [vmem:[#allocation5 + $0x58] sm:$0xff]
    %v72 = vld [vmem:[#allocation5 + $0x60] sm:$0xff]
    %v73 = vld [vmem:[#allocation5 + $0x68] sm:$0xff]
    %v74 = vld [vmem:[#allocation5 + $0x70] sm:$0xff]
    %v75 = vld [vmem:[#allocation5 + $0x78] sm:$0xff]
    %v76 = vld [vmem:[#allocation7] sm:$0x3]
    %v78 = vlaneseq
    %v79 = vshrl.u32 %v78, 7
    %v80 = vsub.s32 0, %v79
    %v81 = vrot.slane %v76, %v80
    %v82 = vlaneseq
    %v83 = vshrl.u32 %v82, 7
    %v84 = vsub.s32 1, %v83
    %v85 = vrot.slane %v76, %v84
    %v104 = vunpack.c.l.b16 %v60
    %v105 = vunpack.c.h.b16 %v60
    %v106 = vunpack.c.l.b16 %v61
    %v107 = vunpack.c.h.b16 %v61
    %v108 = vunpack.c.l.b16 %v62
    %v109 = vunpack.c.h.b16 %v62
    %v110 = vunpack.c.l.b16 %v63
    %v111 = vunpack.c.h.b16 %v63
    %v112 = vunpack.c.l.b16 %v64
    %v113 = vunpack.c.h.b16 %v64
    %v114 = vunpack.c.l.b16 %v65
    %v115 = vunpack.c.h.b16 %v65
    %v116 = vunpack.c.l.b16 %v66
    %v117 = vunpack.c.h.b16 %v66
    %v118 = vunpack.c.l.b16 %v67
    %v119 = vunpack.c.h.b16 %v67
    %v120 = vunpack.c.l.b16 %v68
    %v121 = vunpack.c.h.b16 %v68
    %v122 = vunpack.c.l.b16 %v69
    %v123 = vunpack.c.h.b16 %v69
    %v124 = vunpack.c.l.b16 %v70
    %v125 = vunpack.c.h.b16 %v70
    %v126 = vunpack.c.l.b16 %v71
    %v127 = vunpack.c.h.b16 %v71
    %v128 = vunpack.c.l.b16 %v72
    %v129 = vunpack.c.h.b16 %v72
    %v130 = vunpack.c.l.b16 %v73
    %v131 = vunpack.c.h.b16 %v73
    %v132 = vunpack.c.l.b16 %v74
    %v133 = vunpack.c.h.b16 %v74
    %v134 = vunpack.c.l.b16 %v75
    %v135 = vunpack.c.h.b16 %v75
    %v136 = vpack.c.b16 %v106, %v104
    %v137 = vpack.c.b16 %v107, %v105
    %v138 = vpack.c.b16 %v110, %v108
    %v139 = vpack.c.b16 %v111, %v109
    %v140 = vpack.c.b16 %v114, %v112
    %v141 = vpack.c.b16 %v115, %v113
    %v142 = vpack.c.b16 %v118, %v116
    %v143 = vpack.c.b16 %v119, %v117
    %v144 = vpack.c.b16 %v122, %v120
    %v145 = vpack.c.b16 %v123, %v121
    %v146 = vpack.c.b16 %v126, %v124
    %v147 = vpack.c.b16 %v127, %v125
    %v148 = vpack.c.b16 %v130, %v128
    %v149 = vpack.c.b16 %v131, %v129
    %v150 = vpack.c.b16 %v134, %v132
    %v151 = vpack.c.b16 %v135, %v133
    %168 = vmatprep.subr.bf16.mxu0 %v151
    %169 = vmatpush1.bf16.msra.mxu0 %v150
    %170 = vmatprep.subr.bf16.mxu0 %v149
    %171 = vmatpush1.bf16.msra.mxu0 %v148
    %172 = vmatprep.subr.bf16.mxu0 %v147
    %173 = vmatpush1.bf16.msra.mxu0 %v146
    %174 = vmatprep.subr.bf16.mxu0 %v145
    %175 = vmatpush1.bf16.msra.mxu0 %v144
    %176 = vmatprep.subr.bf16.mxu0 %v143
    %177 = vmatpush1.bf16.msra.mxu0 %v142
    %178 = vmatprep.subr.bf16.mxu0 %v141
    %179 = vmatpush1.bf16.msra.mxu0 %v140
    %180 = vmatprep.subr.bf16.mxu0 %v139
    %181 = vmatpush1.bf16.msra.mxu0 %v138
    %182 = vmatprep.subr.bf16.mxu0 %v137
    %183 = vmatpush1.bf16.msra.mxu0 %v136
    %184 = vmatprep.subr.bf16.mxu0 0
    %185 = vmatpush2.bf16.msra.mxu0 0
    %186 = vmatprep.subr.bf16.mxu0 0
    %187 = vmatpush2.bf16.msra.mxu0 0
    %188 = vmatprep.subr.bf16.mxu0 0
    %189 = vmatpush2.bf16.msra.mxu0 0
    %190 = vmatprep.subr.bf16.mxu0 0
    %191 = vmatpush2.bf16.msra.mxu0 0
    %192 = vmatprep.subr.bf16.mxu0 0
    %193 = vmatpush2.bf16.msra.mxu0 0
    %194 = vmatprep.subr.bf16.mxu0 0
    %195 = vmatpush2.bf16.msra.mxu0 0
    %196 = vmatprep.subr.bf16.mxu0 0
    %197 = vmatpush2.bf16.msra.mxu0 0
    %198 = vmatprep.subr.bf16.mxu0 0
    %199 = vmatpush2.bf16.msra.mxu0 0
    %200 = vmatprep.mubr.bf16.mxu0 0
    %201 = vmatmul.mubr.bf16.gmra.mxu0 %v59
    %v202 = vpop.f32.mrf.mxu0
    %v203 = vadd.f32 %v81, %v202
    %v204 = vpop.f32.mrf.mxu0
    %v205 = vadd.f32 %v85, %v204
    %v206 = vpop.f32.mrf.mxu0
    %v207 = vadd.f32 %v81, %v206
    %v208 = vpop.f32.mrf.mxu0
    %v209 = vadd.f32 %v85, %v208
    %210 = vdwg.mxu0
    %v211 = vmax.f32 %v203, 0.0
    %v212 = vmax.f32 %v207, 0.0
    %v213 = vsub.f32 0.0, %v205
    %v214 = vsub.f32 0.0, %v209
    %v215 = vmul.f32 %v213, 1.442695
    %v216 = vpow.pop %v215
    %v217 = vmul.f32 %v214, 1.442695
    %v218 = vpow.pop %v217
    %v219 = vadd.f32 %v216, 1.0
    %v220 = vadd.f32 %v218, 1.0
    %v221 = vrcp.pop %v219
    %v222 = vrcp.pop %v220
    %v223 = vsub.f32 %v211, %v57
    %v224 = vsub.f32 %v212, %v58
    %v225 = vmul.f32 %v221, %v223
    %v226 = vmul.f32 %v222, %v224
    %v227 = vadd.f32 %v57, %v225
    %v228 = vadd.f32 %v58, %v226
    %v229 = vpack.c.bf16 %v228, %v227
    %s230 = scalar_lea.vmem [#allocation5], 128
    %v231 = vld [vmem:[%s230] sm:$0xff]
    %v232 = vld [vmem:[%s230 + $0x8] sm:$0xff]
    %v233 = vld [vmem:[%s230 + $0x10] sm:$0xff]
    %v234 = vld [vmem:[%s230 + $0x18] sm:$0xff]
    %v235 = vld [vmem:[%s230 + $0x20] sm:$0xff]
    %v236 = vld [vmem:[%s230 + $0x28] sm:$0xff]
    %v237 = vld [vmem:[%s230 + $0x30] sm:$0xff]
    %v238 = vld [vmem:[%s230 + $0x38] sm:$0xff]
    %v239 = vld [vmem:[%s230 + $0x40] sm:$0xff]
    %v240 = vld [vmem:[%s230 + $0x48] sm:$0xff]
    %v241 = vld [vmem:[%s230 + $0x50] sm:$0xff]
    %v242 = vld [vmem:[%s230 + $0x58] sm:$0xff]
    %v243 = vld [vmem:[%s230 + $0x60] sm:$0xff]
    %v244 = vld [vmem:[%s230 + $0x68] sm:$0xff]
    %v245 = vld [vmem:[%s230 + $0x70] sm:$0xff]
    %v246 = vld [vmem:[%s230 + $0x78] sm:$0xff]
    %s247 = scalar_lea.vmem [#allocation7], 2
    %v248 = vld [vmem:[%s247] sm:$0x3]
    %v250 = vlaneseq
    %v251 = vshrl.u32 %v250, 7
    %v252 = vsub.s32 0, %v251
    %v253 = vrot.slane %v248, %v252
    %v254 = vlaneseq
    %v255 = vshrl.u32 %v254, 7
    %v256 = vsub.s32 1, %v255
    %v257 = vrot.slane %v248, %v256
    %v276 = vunpack.c.l.b16 %v231
    %v277 = vunpack.c.h.b16 %v231
    %v278 = vunpack.c.l.b16 %v232
    %v279 = vunpack.c.h.b16 %v232
    %v280 = vunpack.c.l.b16 %v233
    %v281 = vunpack.c.h.b16 %v233
    %v282 = vunpack.c.l.b16 %v234
    %v283 = vunpack.c.h.b16 %v234
    %v284 = vunpack.c.l.b16 %v235
    %v285 = vunpack.c.h.b16 %v235
    %v286 = vunpack.c.l.b16 %v236
    %v287 = vunpack.c.h.b16 %v236
    %v288 = vunpack.c.l.b16 %v237
    %v289 = vunpack.c.h.b16 %v237
    %v290 = vunpack.c.l.b16 %v238
    %v291 = vunpack.c.h.b16 %v238
    %v292 = vunpack.c.l.b16 %v239
    %v293 = vunpack.c.h.b16 %v239
    %v294 = vunpack.c.l.b16 %v240
    %v295 = vunpack.c.h.b16 %v240
    %v296 = vunpack.c.l.b16 %v241
    %v297 = vunpack.c.h.b16 %v241
    %v298 = vunpack.c.l.b16 %v242
    %v299 = vunpack.c.h.b16 %v242
    %v300 = vunpack.c.l.b16 %v243
    %v301 = vunpack.c.h.b16 %v243
    %v302 = vunpack.c.l.b16 %v244
    %v303 = vunpack.c.h.b16 %v244
    %v304 = vunpack.c.l.b16 %v245
    %v305 = vunpack.c.h.b16 %v245
    %v306 = vunpack.c.l.b16 %v246
    %v307 = vunpack.c.h.b16 %v246
    %v308 = vpack.c.b16 %v278, %v276
    %v309 = vpack.c.b16 %v279, %v277
    %v310 = vpack.c.b16 %v282, %v280
    %v311 = vpack.c.b16 %v283, %v281
    %v312 = vpack.c.b16 %v286, %v284
    %v313 = vpack.c.b16 %v287, %v285
    %v314 = vpack.c.b16 %v290, %v288
    %v315 = vpack.c.b16 %v291, %v289
    %v316 = vpack.c.b16 %v294, %v292
    %v317 = vpack.c.b16 %v295, %v293
    %v318 = vpack.c.b16 %v298, %v296
    %v319 = vpack.c.b16 %v299, %v297
    %v320 = vpack.c.b16 %v302, %v300
    %v321 = vpack.c.b16 %v303, %v301
    %v322 = vpack.c.b16 %v306, %v304
    %v323 = vpack.c.b16 %v307, %v305
    %340 = vmatprep.subr.bf16.mxu0 %v323
    %341 = vmatpush1.bf16.msra.mxu0 %v322
    %342 = vmatprep.subr.bf16.mxu0 %v321
    %343 = vmatpush1.bf16.msra.mxu0 %v320
    %344 = vmatprep.subr.bf16.mxu0 %v319
    %345 = vmatpush1.bf16.msra.mxu0 %v318
    %346 = vmatprep.subr.bf16.mxu0 %v317
    %347 = vmatpush1.bf16.msra.mxu0 %v316
    %348 = vmatprep.subr.bf16.mxu0 %v315
    %349 = vmatpush1.bf16.msra.mxu0 %v314
    %350 = vmatprep.subr.bf16.mxu0 %v313
    %351 = vmatpush1.bf16.msra.mxu0 %v312
    %352 = vmatprep.subr.bf16.mxu0 %v311
    %353 = vmatpush1.bf16.msra.mxu0 %v310
    %354 = vmatprep.subr.bf16.mxu0 %v309
    %355 = vmatpush1.bf16.msra.mxu0 %v308
    %356 = vmatprep.subr.bf16.mxu0 0
    %357 = vmatpush2.bf16.msra.mxu0 0
    %358 = vmatprep.subr.bf16.mxu0 0
    %359 = vmatpush2.bf16.msra.mxu0 0
    %360 = vmatprep.subr.bf16.mxu0 0
    %361 = vmatpush2.bf16.msra.mxu0 0
    %362 = vmatprep.subr.bf16.mxu0 0
    %363 = vmatpush2.bf16.msra.mxu0 0
    %364 = vmatprep.subr.bf16.mxu0 0
    %365 = vmatpush2.bf16.msra.mxu0 0
    %366 = vmatprep.subr.bf16.mxu0 0
    %367 = vmatpush2.bf16.msra.mxu0 0
    %368 = vmatprep.subr.bf16.mxu0 0
    %369 = vmatpush2.bf16.msra.mxu0 0
    %370 = vmatprep.subr.bf16.mxu0 0
    %371 = vmatpush2.bf16.msra.mxu0 0
    %372 = vmatprep.mubr.bf16.mxu0 0
    %373 = vmatmul.mubr.bf16.gmra.mxu0 %v229
    %v374 = vpop.f32.mrf.mxu0
    %v375 = vadd.f32 %v253, %v374
    %v376 = vpop.f32.mrf.mxu0
    %v377 = vadd.f32 %v257, %v376
    %v378 = vpop.f32.mrf.mxu0
    %v379 = vadd.f32 %v253, %v378
    %v380 = vpop.f32.mrf.mxu0
    %v381 = vadd.f32 %v257, %v380
    %382 = vdwg.mxu0
    %v383 = vmax.f32 %v375, 0.0
    %v384 = vmax.f32 %v379, 0.0
    %v385 = vsub.f32 0.0, %v377
    %v386 = vsub.f32 0.0, %v381
    %v387 = vmul.f32 %v385, 1.442695
    %v388 = vpow.pop %v387
    %v389 = vmul.f32 %v386, 1.442695
    %v390 = vpow.pop %v389
    %v391 = vadd.f32 %v388, 1.0
    %v392 = vadd.f32 %v390, 1.0
    %v393 = vrcp.pop %v391
    %v394 = vrcp.pop %v392
    %v395 = vsub.f32 %v383, %v227
    %v396 = vsub.f32 %v384, %v228
    %v397 = vmul.f32 %v393, %v395
    %v398 = vmul.f32 %v394, %v396
    %v399 = vadd.f32 %v227, %v397
    %v400 = vadd.f32 %v228, %v398
    %401 = vst [vmem:[#allocation8] sm:$0xff] %v399
    %402 = vst [vmem:[#allocation8 + $0x8] sm:$0xff] %v400
    // Predicated region
    $region26: #{tpu_custom_call.1} parent=1 // pred_check
      _
    $region27: #{tpu_custom_call.1} parent=1 // pred_check_branch
      %404 = sbr.rel (0) target = $region29
    $region28: #{tpu_custom_call.1} parent=1 // pred_region
      %s406 = ssub.s32 256, 256
      %407 = vsyncadd [#allocation4], %s406
      %s408 = sshll.u32 [#allocation8], 4
      %s409 = int_to_ptr.vmem [resolvable:$true] %s408
      %414 = dma.vmem_to_hbm [thread:$0]  %s409, 256, %s3, [#allocation4], 128, 128, 8
    $region29: #{tpu_custom_call.1} parent=1 // pred_fallthru
      _
    // Predicated region
    $region30: #{tpu_custom_call.1} parent=1 // pred_check
      _
    $region31: #{tpu_custom_call.1} parent=1 // pred_check_branch
      %416 = sbr.rel (0) target = $region33
    $region32: #{tpu_custom_call.1} parent=1 // pred_region
      %417 = dma.done [#allocation4], 256
    $region33: #{tpu_custom_call.1} parent=1 // pred_fallthru
      _
    %418 = vsyncpa [#allocation3], 1
    %419 = vsyncpa [#allocation6], 1
    %420 = vsyncpa [#allocation4], 1

</llo_original>
